<compile_context>
chip_gen: v6e
topology: v6e:2x2x1
jax: 0.10.0
libtpu: 0.0.40
codegen_flags: <defaults>
</compile_context>

<pallas_src>
import functools

import jax
import jax.numpy as jnp
from jax.experimental import pallas as pl
from jax.experimental.pallas import tpu as pltpu


# ---- packed parameter slab layout: one (8, 32) f32 array --------------------------
# lanes  0:2   fc1.weight   (8, 2)   [out, in]
# lanes  2:10  fc2.weight   (8, 8)   [out, in]
# lanes 10:18  fc3.weight   (8, 8)   [out, in]
# lane  18     fc4.weight as a column: slab[j, 18] = fc4.weight[0, j]
# lane  19     fc1.bias
# lane  20     fc2.bias
# lane  21     fc3.bias
# lane  22     fc4.bias (replicated down the 8 sublanes)
# lanes 23:32  zero padding
_SLAB_SHAPE = (8, 32)


def pack_params(params):
    """One-time pack of PyTorch-convention Linear params into a single f32 slab.

    Call OUTSIDE the hot loop: all transposes/reshapes happen exactly once here.
    """
    slab = jnp.zeros(_SLAB_SHAPE, jnp.float32)
    slab = slab.at[:, 0:2].set(params["fc1.weight"].astype(jnp.float32))
    slab = slab.at[:, 2:10].set(params["fc2.weight"].astype(jnp.float32))
    slab = slab.at[:, 10:18].set(params["fc3.weight"].astype(jnp.float32))
    slab = slab.at[:, 18].set(params["fc4.weight"][0].astype(jnp.float32))
    slab = slab.at[:, 19].set(params["fc1.bias"].astype(jnp.float32))
    slab = slab.at[:, 20].set(params["fc2.bias"].astype(jnp.float32))
    slab = slab.at[:, 21].set(params["fc3.bias"].astype(jnp.float32))
    slab = slab.at[:, 22].set(jnp.full((8,), params["fc4.bias"][0], jnp.float32))
    return slab


def _simplenet_kernel(xT_ref, p_ref, o_ref):
    p = p_ref[...]                       # (8, 32) resident param slab (one vreg)
    x = xT_ref[...]                      # (2, L): features on sublanes, batch on lanes

    # fc1 (2 -> 8): two broadcast FMAs on the VPU, then ReLU.
    h = p[:, 0:1] * x[0:1, :] + p[:, 1:2] * x[1:2, :] + p[:, 19:20]   # (8, L)
    h = jnp.maximum(h, 0.0)

    # fc2 / fc3 (8 -> 8): 8 sublane-broadcast FMAs each, fully on the VPU (no MXU).
    def dense8_relu(h_in, w_lane0, b_lane):
        acc = jnp.broadcast_to(p[:, b_lane:b_lane + 1], h_in.shape)   # bias
        for k in range(8):                                            # static unroll
            acc = acc + p[:, w_lane0 + k:w_lane0 + k + 1] * h_in[k:k + 1, :]
        return jnp.maximum(acc, 0.0)

    h = dense8_relu(h, 2, 20)    # fc2
    h = dense8_relu(h, 10, 21)   # fc3

    # fc4 (8 -> 1): elementwise multiply + cross-sublane (XLU) reduce -> lane-dense row.
    z = jnp.sum(h * p[:, 18:19], axis=0, keepdims=True) + p[0:1, 22:23]   # (1, L)

    # Numerically stable sigmoid: exp(-|z|) never overflows; exp + approximate
    # reciprocal both run on the EUP, select on the VPU.
    e = jnp.exp(-jnp.abs(z))
    s_abs = pl.reciprocal(1.0 + e, approx=True)        # sigmoid(|z|)
    o_ref[...] = jnp.where(z >= 0.0, s_abs, 1.0 - s_abs)


def simplenet_forward(x, packed_params, *, block_lanes=2048):
    """x: (B, 2) float32. packed_params: (8, 32) f32 slab from pack_params()."""
    B = x.shape[0]

    # Batch is tiled along the 128-wide lane axis.  Aim for >=2 grid steps when B
    # allows it (v7x shards the "parallel" axis across its 2 TensorCores), capped at
    # block_lanes so vreg pressure stays bounded for large batches.
    half = (B + 1) // 2
    blk = min(block_lanes, max(128, ((half + 127) // 128) * 128))
    blk = ((blk + 127) // 128) * 128
    b_pad = ((B + blk - 1) // blk) * blk
    grid = (b_pad // blk,)

    # One transpose + pad in the wrapper: features on sublanes, batch on lanes.
    xT = jnp.pad(x.astype(jnp.float32).T, ((0, 0), (0, b_pad - B)))   # (2, b_pad)

    out = pl.pallas_call(
        _simplenet_kernel,
        out_shape=jax.ShapeDtypeStruct((1, b_pad), jnp.float32),      # 4 B/row writeback
        grid_spec=pltpu.PrefetchScalarGridSpec(
            num_scalar_prefetch=0,
            grid=grid,
            in_specs=[
                pl.BlockSpec((2, blk), lambda i: (0, i)),       # activations: lane tiles
                pl.BlockSpec(_SLAB_SHAPE, lambda i: (0, 0)),    # params: one resident slab
            ],
            out_specs=pl.BlockSpec((1, blk), lambda i: (0, i)),
        ),
        compiler_params=pltpu.CompilerParams(
            dimension_semantics=("parallel",),                  # lane blocks independent
        ),
        cost_estimate=pl.CostEstimate(
            flops=300 * b_pad,            # ~2*(2*8 + 8*8 + 8*8 + 8) MACs per row
            transcendentals=b_pad,        # one exp per row
            bytes_accessed=12 * b_pad + 1024,
        ),
    )(xT, packed_params)

    return out[0, :B].reshape(B, 1)


def init_params(key):
    """Deterministic init matching nn.Linear shapes (weight: (out, in), bias: (out,))."""
    shapes = {
        "fc1.weight": (8, 2), "fc1.bias": (8,),
        "fc2.weight": (8, 8), "fc2.bias": (8,),
        "fc3.weight": (8, 8), "fc3.bias": (8,),
        "fc4.weight": (1, 8), "fc4.bias": (1,),
    }
    params = {}
    for name, shape in shapes.items():
        key, sub = jax.random.split(key)
        fan_in = shape[-1] if name.endswith("weight") else shape[0]
        bound = 1.0 / jnp.sqrt(jnp.float32(fan_in))
        params[name] = jax.random.uniform(sub, shape, jnp.float32, -bound, bound)
    return params


def reference_forward(x, params):
    h = jnp.maximum(x @ params["fc1.weight"].T + params["fc1.bias"], 0.0)
    h = jnp.maximum(h @ params["fc2.weight"].T + params["fc2.bias"], 0.0)
    h = jnp.maximum(h @ params["fc3.weight"].T + params["fc3.bias"], 0.0)
    h = h @ params["fc4.weight"].T + params["fc4.bias"]
    return jax.nn.sigmoid(h)


if __name__ == "__main__":
    key = jax.random.PRNGKey(0)
    pkey, xkey = jax.random.split(key)
    params = init_params(pkey)

    # One-time packing outside the hot path.
    packed = pack_params(params)

    B = 8
    x = jax.random.normal(xkey, (B, 2), jnp.float32)

    fwd = jax.jit(functools.partial(simplenet_forward, block_lanes=2048))
    out = fwd(x, packed)
    jax.block_until_ready(out)

    ref = reference_forward(x, params)
    assert out.shape == (B, 1)
    # Only approximation vs. the exact reference is the EUP approximate reciprocal
    # inside the sigmoid (~2^-12 relative); 5e-3 bounds it comfortably.
    err = jnp.max(jnp.abs(out - ref))
    assert jnp.allclose(out, ref, atol=5e-3, rtol=5e-3), f"max abs err = {err}"

    print("KERNEL_OK")
</pallas_src>

<mosaic_0001>
module attributes {stable_mosaic.version = 11 : i64} {
  func.func @_simplenet_kernel(%arg0: i32, %arg1: memref<2x128xf32, #tpu.memory_space<vmem>>, %arg2: memref<8x32xf32, #tpu.memory_space<vmem>>, %arg3: memref<1x128xf32, #tpu.memory_space<vmem>>) attributes {dimension_semantics = [#tpu.dimension_semantics<parallel>], iteration_bounds = array<i64: 1>, scalar_prefetch = 0 : i64, scratch_operands = 0 : i64, tpu.core_type = #tpu.core_type<tc>, window_params = [{transform_indices = @transform_0, window_bounds = array<i64: 2, 128>}, {pipeline_mode = #tpu.pipeline_mode<synchronous>, transform_indices = @transform_1, window_bounds = array<i64: 8, 32>}, {transform_indices = @transform_2, window_bounds = array<i64: 1, 128>}]} {
    %c0 = arith.constant 0 : index
    %c0_0 = arith.constant 0 : index
    %0 = vector.load %arg2[%c0, %c0_0] : memref<8x32xf32, #tpu.memory_space<vmem>>, vector<8x32xf32>
    %c0_1 = arith.constant 0 : index
    %c0_2 = arith.constant 0 : index
    %1 = vector.load %arg1[%c0_1, %c0_2] : memref<2x128xf32, #tpu.memory_space<vmem>>, vector<2x128xf32>
    %2 = vector.extract_strided_slice %0 {offsets = [0, 0], sizes = [8, 1], strides = [1, 1]} : vector<8x32xf32> to vector<8x1xf32>
    %3 = vector.extract_strided_slice %1 {offsets = [0, 0], sizes = [1, 128], strides = [1, 1]} : vector<2x128xf32> to vector<1x128xf32>
    %4 = vector.broadcast %2 : vector<8x1xf32> to vector<8x128xf32>
    %5 = vector.broadcast %3 : vector<1x128xf32> to vector<8x128xf32>
    %6 = arith.mulf %4, %5 : vector<8x128xf32>
    %7 = vector.extract_strided_slice %0 {offsets = [0, 1], sizes = [8, 1], strides = [1, 1]} : vector<8x32xf32> to vector<8x1xf32>
    %8 = vector.extract_strided_slice %1 {offsets = [1, 0], sizes = [1, 128], strides = [1, 1]} : vector<2x128xf32> to vector<1x128xf32>
    %9 = vector.broadcast %7 : vector<8x1xf32> to vector<8x128xf32>
    %10 = vector.broadcast %8 : vector<1x128xf32> to vector<8x128xf32>
    %11 = arith.mulf %9, %10 : vector<8x128xf32>
    %12 = arith.addf %6, %11 : vector<8x128xf32>
    %13 = vector.extract_strided_slice %0 {offsets = [0, 19], sizes = [8, 1], strides = [1, 1]} : vector<8x32xf32> to vector<8x1xf32>
    %14 = vector.broadcast %13 : vector<8x1xf32> to vector<8x128xf32>
    %15 = arith.addf %12, %14 : vector<8x128xf32>
    %cst = arith.constant 0.000000e+00 : f32
    %16 = vector.broadcast %cst : f32 to vector<8x128xf32>
    %17 = arith.maximumf %15, %16 : vector<8x128xf32>
    %18 = vector.extract_strided_slice %0 {offsets = [0, 20], sizes = [8, 1], strides = [1, 1]} : vector<8x32xf32> to vector<8x1xf32>
    %19 = vector.shape_cast %18 : vector<8x1xf32> to vector<8x1xf32>
    %20 = vector.broadcast %19 : vector<8x1xf32> to vector<8x128xf32>
    %21 = vector.extract_strided_slice %0 {offsets = [0, 2], sizes = [8, 1], strides = [1, 1]} : vector<8x32xf32> to vector<8x1xf32>
    %22 = vector.extract_strided_slice %17 {offsets = [0, 0], sizes = [1, 128], strides = [1, 1]} : vector<8x128xf32> to vector<1x128xf32>
    %23 = vector.broadcast %21 : vector<8x1xf32> to vector<8x128xf32>
    %24 = vector.broadcast %22 : vector<1x128xf32> to vector<8x128xf32>
    %25 = arith.mulf %23, %24 : vector<8x128xf32>
    %26 = arith.addf %20, %25 : vector<8x128xf32>
    %27 = vector.extract_strided_slice %0 {offsets = [0, 3], sizes = [8, 1], strides = [1, 1]} : vector<8x32xf32> to vector<8x1xf32>
    %28 = vector.extract_strided_slice %17 {offsets = [1, 0], sizes = [1, 128], strides = [1, 1]} : vector<8x128xf32> to vector<1x128xf32>
    %29 = vector.broadcast %27 : vector<8x1xf32> to vector<8x128xf32>
    %30 = vector.broadcast %28 : vector<1x128xf32> to vector<8x128xf32>
    %31 = arith.mulf %29, %30 : vector<8x128xf32>
    %32 = arith.addf %26, %31 : vector<8x128xf32>
    %33 = vector.extract_strided_slice %0 {offsets = [0, 4], sizes = [8, 1], strides = [1, 1]} : vector<8x32xf32> to vector<8x1xf32>
    %34 = vector.extract_strided_slice %17 {offsets = [2, 0], sizes = [1, 128], strides = [1, 1]} : vector<8x128xf32> to vector<1x128xf32>
    %35 = vector.broadcast %33 : vector<8x1xf32> to vector<8x128xf32>
    %36 = vector.broadcast %34 : vector<1x128xf32> to vector<8x128xf32>
    %37 = arith.mulf %35, %36 : vector<8x128xf32>
    %38 = arith.addf %32, %37 : vector<8x128xf32>
    %39 = vector.extract_strided_slice %0 {offsets = [0, 5], sizes = [8, 1], strides = [1, 1]} : vector<8x32xf32> to vector<8x1xf32>
    %40 = vector.extract_strided_slice %17 {offsets = [3, 0], sizes = [1, 128], strides = [1, 1]} : vector<8x128xf32> to vector<1x128xf32>
    %41 = vector.broadcast %39 : vector<8x1xf32> to vector<8x128xf32>
    %42 = vector.broadcast %40 : vector<1x128xf32> to vector<8x128xf32>
    %43 = arith.mulf %41, %42 : vector<8x128xf32>
    %44 = arith.addf %38, %43 : vector<8x128xf32>
    %45 = vector.extract_strided_slice %0 {offsets = [0, 6], sizes = [8, 1], strides = [1, 1]} : vector<8x32xf32> to vector<8x1xf32>
    %46 = vector.extract_strided_slice %17 {offsets = [4, 0], sizes = [1, 128], strides = [1, 1]} : vector<8x128xf32> to vector<1x128xf32>
    %47 = vector.broadcast %45 : vector<8x1xf32> to vector<8x128xf32>
    %48 = vector.broadcast %46 : vector<1x128xf32> to vector<8x128xf32>
    %49 = arith.mulf %47, %48 : vector<8x128xf32>
    %50 = arith.addf %44, %49 : vector<8x128xf32>
    %51 = vector.extract_strided_slice %0 {offsets = [0, 7], sizes = [8, 1], strides = [1, 1]} : vector<8x32xf32> to vector<8x1xf32>
    %52 = vector.extract_strided_slice %17 {offsets = [5, 0], sizes = [1, 128], strides = [1, 1]} : vector<8x128xf32> to vector<1x128xf32>
    %53 = vector.broadcast %51 : vector<8x1xf32> to vector<8x128xf32>
    %54 = vector.broadcast %52 : vector<1x128xf32> to vector<8x128xf32>
    %55 = arith.mulf %53, %54 : vector<8x128xf32>
    %56 = arith.addf %50, %55 : vector<8x128xf32>
    %57 = vector.extract_strided_slice %0 {offsets = [0, 8], sizes = [8, 1], strides = [1, 1]} : vector<8x32xf32> to vector<8x1xf32>
    %58 = vector.extract_strided_slice %17 {offsets = [6, 0], sizes = [1, 128], strides = [1, 1]} : vector<8x128xf32> to vector<1x128xf32>
    %59 = vector.broadcast %57 : vector<8x1xf32> to vector<8x128xf32>
    %60 = vector.broadcast %58 : vector<1x128xf32> to vector<8x128xf32>
    %61 = arith.mulf %59, %60 : vector<8x128xf32>
    %62 = arith.addf %56, %61 : vector<8x128xf32>
    %63 = vector.extract_strided_slice %0 {offsets = [0, 9], sizes = [8, 1], strides = [1, 1]} : vector<8x32xf32> to vector<8x1xf32>
    %64 = vector.extract_strided_slice %17 {offsets = [7, 0], sizes = [1, 128], strides = [1, 1]} : vector<8x128xf32> to vector<1x128xf32>
    %65 = vector.broadcast %63 : vector<8x1xf32> to vector<8x128xf32>
    %66 = vector.broadcast %64 : vector<1x128xf32> to vector<8x128xf32>
    %67 = arith.mulf %65, %66 : vector<8x128xf32>
    %68 = arith.addf %62, %67 : vector<8x128xf32>
    %cst_3 = arith.constant 0.000000e+00 : f32
    %69 = vector.broadcast %cst_3 : f32 to vector<8x128xf32>
    %70 = arith.maximumf %68, %69 : vector<8x128xf32>
    %71 = vector.extract_strided_slice %0 {offsets = [0, 21], sizes = [8, 1], strides = [1, 1]} : vector<8x32xf32> to vector<8x1xf32>
    %72 = vector.shape_cast %71 : vector<8x1xf32> to vector<8x1xf32>
    %73 = vector.broadcast %72 : vector<8x1xf32> to vector<8x128xf32>
    %74 = vector.extract_strided_slice %0 {offsets = [0, 10], sizes = [8, 1], strides = [1, 1]} : vector<8x32xf32> to vector<8x1xf32>
    %75 = vector.extract_strided_slice %70 {offsets = [0, 0], sizes = [1, 128], strides = [1, 1]} : vector<8x128xf32> to vector<1x128xf32>
    %76 = vector.broadcast %74 : vector<8x1xf32> to vector<8x128xf32>
    %77 = vector.broadcast %75 : vector<1x128xf32> to vector<8x128xf32>
    %78 = arith.mulf %76, %77 : vector<8x128xf32>
    %79 = arith.addf %73, %78 : vector<8x128xf32>
    %80 = vector.extract_strided_slice %0 {offsets = [0, 11], sizes = [8, 1], strides = [1, 1]} : vector<8x32xf32> to vector<8x1xf32>
    %81 = vector.extract_strided_slice %70 {offsets = [1, 0], sizes = [1, 128], strides = [1, 1]} : vector<8x128xf32> to vector<1x128xf32>
    %82 = vector.broadcast %80 : vector<8x1xf32> to vector<8x128xf32>
    %83 = vector.broadcast %81 : vector<1x128xf32> to vector<8x128xf32>
    %84 = arith.mulf %82, %83 : vector<8x128xf32>
    %85 = arith.addf %79, %84 : vector<8x128xf32>
    %86 = vector.extract_strided_slice %0 {offsets = [0, 12], sizes = [8, 1], strides = [1, 1]} : vector<8x32xf32> to vector<8x1xf32>
    %87 = vector.extract_strided_slice %70 {offsets = [2, 0], sizes = [1, 128], strides = [1, 1]} : vector<8x128xf32> to vector<1x128xf32>
    %88 = vector.broadcast %86 : vector<8x1xf32> to vector<8x128xf32>
    %89 = vector.broadcast %87 : vector<1x128xf32> to vector<8x128xf32>
    %90 = arith.mulf %88, %89 : vector<8x128xf32>
    %91 = arith.addf %85, %90 : vector<8x128xf32>
    %92 = vector.extract_strided_slice %0 {offsets = [0, 13], sizes = [8, 1], strides = [1, 1]} : vector<8x32xf32> to vector<8x1xf32>
    %93 = vector.extract_strided_slice %70 {offsets = [3, 0], sizes = [1, 128], strides = [1, 1]} : vector<8x128xf32> to vector<1x128xf32>
    %94 = vector.broadcast %92 : vector<8x1xf32> to vector<8x128xf32>
    %95 = vector.broadcast %93 : vector<1x128xf32> to vector<8x128xf32>
    %96 = arith.mulf %94, %95 : vector<8x128xf32>
    %97 = arith.addf %91, %96 : vector<8x128xf32>
    %98 = vector.extract_strided_slice %0 {offsets = [0, 14], sizes = [8, 1], strides = [1, 1]} : vector<8x32xf32> to vector<8x1xf32>
    %99 = vector.extract_strided_slice %70 {offsets = [4, 0], sizes = [1, 128], strides = [1, 1]} : vector<8x128xf32> to vector<1x128xf32>
    %100 = vector.broadcast %98 : vector<8x1xf32> to vector<8x128xf32>
    %101 = vector.broadcast %99 : vector<1x128xf32> to vector<8x128xf32>
    %102 = arith.mulf %100, %101 : vector<8x128xf32>
    %103 = arith.addf %97, %102 : vector<8x128xf32>
    %104 = vector.extract_strided_slice %0 {offsets = [0, 15], sizes = [8, 1], strides = [1, 1]} : vector<8x32xf32> to vector<8x1xf32>
    %105 = vector.extract_strided_slice %70 {offsets = [5, 0], sizes = [1, 128], strides = [1, 1]} : vector<8x128xf32> to vector<1x128xf32>
    %106 = vector.broadcast %104 : vector<8x1xf32> to vector<8x128xf32>
    %107 = vector.broadcast %105 : vector<1x128xf32> to vector<8x128xf32>
    %108 = arith.mulf %106, %107 : vector<8x128xf32>
    %109 = arith.addf %103, %108 : vector<8x128xf32>
    %110 = vector.extract_strided_slice %0 {offsets = [0, 16], sizes = [8, 1], strides = [1, 1]} : vector<8x32xf32> to vector<8x1xf32>
    %111 = vector.extract_strided_slice %70 {offsets = [6, 0], sizes = [1, 128], strides = [1, 1]} : vector<8x128xf32> to vector<1x128xf32>
    %112 = vector.broadcast %110 : vector<8x1xf32> to vector<8x128xf32>
    %113 = vector.broadcast %111 : vector<1x128xf32> to vector<8x128xf32>
    %114 = arith.mulf %112, %113 : vector<8x128xf32>
    %115 = arith.addf %109, %114 : vector<8x128xf32>
    %116 = vector.extract_strided_slice %0 {offsets = [0, 17], sizes = [8, 1], strides = [1, 1]} : vector<8x32xf32> to vector<8x1xf32>
    %117 = vector.extract_strided_slice %70 {offsets = [7, 0], sizes = [1, 128], strides = [1, 1]} : vector<8x128xf32> to vector<1x128xf32>
    %118 = vector.broadcast %116 : vector<8x1xf32> to vector<8x128xf32>
    %119 = vector.broadcast %117 : vector<1x128xf32> to vector<8x128xf32>
    %120 = arith.mulf %118, %119 : vector<8x128xf32>
    %121 = arith.addf %115, %120 : vector<8x128xf32>
    %cst_4 = arith.constant 0.000000e+00 : f32
    %122 = vector.broadcast %cst_4 : f32 to vector<8x128xf32>
    %123 = arith.maximumf %121, %122 : vector<8x128xf32>
    %124 = vector.extract_strided_slice %0 {offsets = [0, 18], sizes = [8, 1], strides = [1, 1]} : vector<8x32xf32> to vector<8x1xf32>
    %125 = vector.broadcast %124 : vector<8x1xf32> to vector<8x128xf32>
    %126 = arith.mulf %123, %125 : vector<8x128xf32>
    %cst_5 = arith.constant dense<0.000000e+00> : vector<128xf32>
    %127 = vector.multi_reduction <add>, %126, %cst_5 [0] : vector<8x128xf32> to vector<128xf32>
    %128 = vector.shape_cast %127 : vector<128xf32> to vector<1x128xf32>
    %129 = vector.extract_strided_slice %0 {offsets = [0, 22], sizes = [1, 1], strides = [1, 1]} : vector<8x32xf32> to vector<1x1xf32>
    %130 = vector.broadcast %129 : vector<1x1xf32> to vector<1x128xf32>
    %131 = arith.addf %128, %130 : vector<1x128xf32>
    %132 = math.absf %131 : vector<1x128xf32>
    %cst_6 = arith.constant 0.000000e+00 : f32
    %133 = vector.broadcast %cst_6 : f32 to vector<1x128xf32>
    %134 = arith.subf %133, %132 : vector<1x128xf32>
    %135 = math.exp %134 : vector<1x128xf32>
    %cst_7 = arith.constant 1.000000e+00 : f32
    %136 = vector.broadcast %cst_7 : f32 to vector<1x128xf32>
    %137 = arith.addf %136, %135 : vector<1x128xf32>
    %138 = tpu.reciprocal %137 {approx = true} : vector<1x128xf32> -> vector<1x128xf32>
    %cst_8 = arith.constant 0.000000e+00 : f32
    %139 = vector.broadcast %cst_8 : f32 to vector<1x128xf32>
    %140 = arith.cmpf oge, %131, %139 : vector<1x128xf32>
    %cst_9 = arith.constant 1.000000e+00 : f32
    %141 = vector.broadcast %cst_9 : f32 to vector<1x128xf32>
    %142 = arith.subf %141, %138 : vector<1x128xf32>
    %143 = arith.select %140, %138, %142 : vector<1x128xi1>, vector<1x128xf32>
    %c0_10 = arith.constant 0 : index
    %c0_11 = arith.constant 0 : index
    %144 = vector.load %arg3[%c0_10, %c0_11] : memref<1x128xf32, #tpu.memory_space<vmem>>, vector<1x128xf32>
    tpu.vector_store %arg3[%c0_10, %c0_11], %143 {strides = array<i32>} : memref<1x128xf32, #tpu.memory_space<vmem>>, vector<1x128xf32>,
    return
  }
  func.func @transform_0(%arg0: i32) -> (i32, i32) {
    %c0_i32 = arith.constant 0 : i32
    %c0_i32_0 = arith.constant 0 : i32
    return %c0_i32, %arg0 : i32, i32
  }
  func.func @transform_1(%arg0: i32) -> (i32, i32) {
    %c0_i32 = arith.constant 0 : i32
    %c0_i32_0 = arith.constant 0 : i32
    %c0_i32_1 = arith.constant 0 : i32
    return %c0_i32, %c0_i32_0 : i32, i32
  }
  func.func @transform_2(%arg0: i32) -> (i32, i32) {
    %c0_i32 = arith.constant 0 : i32
    %c0_i32_0 = arith.constant 0 : i32
    return %c0_i32, %arg0 : i32, i32
  }
}

</mosaic_0001>

<llo_original>
// kernel: simplenet_forward.1
$region0: #{simplenet_forward.1}
  #allocation0 [shape = 'u32[]', space=smem, size = 0x4, offset = 0x4, fixed_abs, tag = 'smem constant byte address 0x4 - core index']
  #allocation1 [shape = 'u32[144,128]{1,0:T(1,128)}', space=vmem, size = 0x12000, scoped, tag = 'internal scratch']
  %s0 = inlined_call_operand.vmem [shape: f32[2,128], index: 0, kind: input, shape index: {}]
  %s1 = inlined_call_operand.vmem [shape: f32[8,32], index: 1, kind: input, shape index: {}]
  %s2 = inlined_call_operand.vmem [shape: f32[1,128], index: 2, kind: output, shape index: {}]
  %s3 = sld [smem:[#allocation0]]
  $region18: #{simplenet_forward.1} parent=0
    _
  %s5 = ssub.s32 1, %s3
  %s6 = scalar_select 0, %s5, %s3
  // Predicated region
  $region2: #{simplenet_forward.1} parent=0 // pred_check
    _
  $region3: #{simplenet_forward.1} parent=0 // pred_check_branch
    %8 = sbr.rel (0) target = $region5
  $region4: #{simplenet_forward.1} parent=0 // pred_region
    _
  $region5: #{simplenet_forward.1} parent=0 // pred_fallthru
    _
  // Predicated region
  $region6: #{simplenet_forward.1} parent=0 // pred_check
    _
  $region7: #{simplenet_forward.1} parent=0 // pred_check_branch
    %10 = sbr.rel (0) target = $region9
  $region8: #{simplenet_forward.1} parent=0 // pred_region
    _
  $region9: #{simplenet_forward.1} parent=0 // pred_fallthru
    _
  %v11 = vld [vmem:[%s1] sm:$0xff]
  %v12 = vld [vmem:[%s0] sm:$0x3]
  %14 = vset.pattern.permute.xlu0 0
  %15 = vperm.xlu0 %14, %v11
  %v16 = vpop.permute.xlu0 %15
  %v18 = vlaneseq
  %v19 = vshrl.u32 %v18, 7
  %v20 = vsub.s32 0, %v19
  %v21 = vrot.slane %v12, %v20
  %v22 = vmul.f32 %v16, %v21
  %23 = vset.pattern.permute.xlu0 1
  %24 = vperm.xlu0 %23, %v11
  %v25 = vpop.permute.xlu0 %24
  %v27 = vlaneseq
  %v28 = vshrl.u32 %v27, 7
  %v29 = vsub.s32 1, %v28
  %v30 = vrot.slane %v12, %v29
  %v31 = vmul.f32 %v25, %v30
  %v32 = vadd.f32 %v22, %v31
  %33 = vset.pattern.permute.xlu0 19
  %34 = vperm.xlu0 %33, %v11
  %v35 = vpop.permute.xlu0 %34
  %v37 = vadd.f32 %v32, %v35
  %v38 = vmax.f32 %v37, 0.0
  %39 = vset.pattern.permute.xlu0 20
  %40 = vperm.xlu0 %39, %v11
  %v41 = vpop.permute.xlu0 %40
  %43 = vset.pattern.permute.xlu0 2
  %44 = vperm.xlu0 %43, %v11
  %v45 = vpop.permute.xlu0 %44
  %v47 = vlaneseq
  %v48 = vshrl.u32 %v47, 7
  %v49 = vsub.s32 0, %v48
  %v50 = vrot.slane %v38, %v49
  %v51 = vmul.f32 %v45, %v50
  %v52 = vadd.f32 %v41, %v51
  %53 = vset.pattern.permute.xlu0 3
  %54 = vperm.xlu0 %53, %v11
  %v55 = vpop.permute.xlu0 %54
  %v57 = vlaneseq
  %v58 = vshrl.u32 %v57, 7
  %v59 = vsub.s32 1, %v58
  %v60 = vrot.slane %v38, %v59
  %v61 = vmul.f32 %v55, %v60
  %v62 = vadd.f32 %v52, %v61
  %63 = vset.pattern.permute.xlu0 4
  %64 = vperm.xlu0 %63, %v11
  %v65 = vpop.permute.xlu0 %64
  %v67 = vlaneseq
  %v68 = vshrl.u32 %v67, 7
  %v69 = vsub.s32 2, %v68
  %v70 = vrot.slane %v38, %v69
  %v71 = vmul.f32 %v65, %v70
  %v72 = vadd.f32 %v62, %v71
  %73 = vset.pattern.permute.xlu0 5
  %74 = vperm.xlu0 %73, %v11
  %v75 = vpop.permute.xlu0 %74
  %v77 = vlaneseq
  %v78 = vshrl.u32 %v77, 7
  %v79 = vsub.s32 3, %v78
  %v80 = vrot.slane %v38, %v79
  %v81 = vmul.f32 %v75, %v80
  %v82 = vadd.f32 %v72, %v81
  %83 = vset.pattern.permute.xlu0 6
  %84 = vperm.xlu0 %83, %v11
  %v85 = vpop.permute.xlu0 %84
  %v87 = vlaneseq
  %v88 = vshrl.u32 %v87, 7
  %v89 = vsub.s32 4, %v88
  %v90 = vrot.slane %v38, %v89
  %v91 = vmul.f32 %v85, %v90
  %v92 = vadd.f32 %v82, %v91
  %93 = vset.pattern.permute.xlu0 7
  %94 = vperm.xlu0 %93, %v11
  %v95 = vpop.permute.xlu0 %94
  %v97 = vlaneseq
  %v98 = vshrl.u32 %v97, 7
  %v99 = vsub.s32 5, %v98
  %v100 = vrot.slane %v38, %v99
  %v101 = vmul.f32 %v95, %v100
  %v102 = vadd.f32 %v92, %v101
  %103 = vset.pattern.permute.xlu0 8
  %104 = vperm.xlu0 %103, %v11
  %v105 = vpop.permute.xlu0 %104
  %v107 = vlaneseq
  %v108 = vshrl.u32 %v107, 7
  %v109 = vsub.s32 6, %v108
  %v110 = vrot.slane %v38, %v109
  %v111 = vmul.f32 %v105, %v110
  %v112 = vadd.f32 %v102, %v111
  %113 = vset.pattern.permute.xlu0 9
  %114 = vperm.xlu0 %113, %v11
  %v115 = vpop.permute.xlu0 %114
  %v117 = vlaneseq
  %v118 = vshrl.u32 %v117, 7
  %v119 = vsub.s32 7, %v118
  %v120 = vrot.slane %v38, %v119
  %v121 = vmul.f32 %v115, %v120
  %v122 = vadd.f32 %v112, %v121
  %v123 = vmax.f32 %v122, 0.0
  %124 = vset.pattern.permute.xlu0 21
  %125 = vperm.xlu0 %124, %v11
  %v126 = vpop.permute.xlu0 %125
  %128 = vset.pattern.permute.xlu0 10
  %129 = vperm.xlu0 %128, %v11
  %v130 = vpop.permute.xlu0 %129
  %v132 = vlaneseq
  %v133 = vshrl.u32 %v132, 7
  %v134 = vsub.s32 0, %v133
  %v135 = vrot.slane %v123, %v134
  %v136 = vmul.f32 %v130, %v135
  %v137 = vadd.f32 %v126, %v136
  %138 = vset.pattern.permute.xlu0 11
  %139 = vperm.xlu0 %138, %v11
  %v140 = vpop.permute.xlu0 %139
  %v142 = vlaneseq
  %v143 = vshrl.u32 %v142, 7
  %v144 = vsub.s32 1, %v143
  %v145 = vrot.slane %v123, %v144
  %v146 = vmul.f32 %v140, %v145
  %v147 = vadd.f32 %v137, %v146
  %148 = vset.pattern.permute.xlu0 12
  %149 = vperm.xlu0 %148, %v11
  %v150 = vpop.permute.xlu0 %149
  %v152 = vlaneseq
  %v153 = vshrl.u32 %v152, 7
  %v154 = vsub.s32 2, %v153
  %v155 = vrot.slane %v123, %v154
  %v156 = vmul.f32 %v150, %v155
  %v157 = vadd.f32 %v147, %v156
  %158 = vset.pattern.permute.xlu0 13
  %159 = vperm.xlu0 %158, %v11
  %v160 = vpop.permute.xlu0 %159
  %v162 = vlaneseq
  %v163 = vshrl.u32 %v162, 7
  %v164 = vsub.s32 3, %v163
  %v165 = vrot.slane %v123, %v164
  %v166 = vmul.f32 %v160, %v165
  %v167 = vadd.f32 %v157, %v166
  %168 = vset.pattern.permute.xlu0 14
  %169 = vperm.xlu0 %168, %v11
  %v170 = vpop.permute.xlu0 %169
  %v172 = vlaneseq
  %v173 = vshrl.u32 %v172, 7
  %v174 = vsub.s32 4, %v173
  %v175 = vrot.slane %v123, %v174
  %v176 = vmul.f32 %v170, %v175
  %v177 = vadd.f32 %v167, %v176
  %178 = vset.pattern.permute.xlu0 15
  %179 = vperm.xlu0 %178, %v11
  %v180 = vpop.permute.xlu0 %179
  %v182 = vlaneseq
  %v183 = vshrl.u32 %v182, 7
  %v184 = vsub.s32 5, %v183
  %v185 = vrot.slane %v123, %v184
  %v186 = vmul.f32 %v180, %v185
  %v187 = vadd.f32 %v177, %v186
  %188 = vset.pattern.permute.xlu0 16
  %189 = vperm.xlu0 %188, %v11
  %v190 = vpop.permute.xlu0 %189
  %v192 = vlaneseq
  %v193 = vshrl.u32 %v192, 7
  %v194 = vsub.s32 6, %v193
  %v195 = vrot.slane %v123, %v194
  %v196 = vmul.f32 %v190, %v195
  %v197 = vadd.f32 %v187, %v196
  %198 = vset.pattern.permute.xlu0 17
  %199 = vperm.xlu0 %198, %v11
  %v200 = vpop.permute.xlu0 %199
  %v202 = vlaneseq
  %v203 = vshrl.u32 %v202, 7
  %v204 = vsub.s32 7, %v203
  %v205 = vrot.slane %v123, %v204
  %v206 = vmul.f32 %v200, %v205
  %v207 = vadd.f32 %v197, %v206
  %v208 = vmax.f32 %v207, 0.0
  %209 = vset.pattern.permute.xlu0 18
  %210 = vperm.xlu0 %209, %v11
  %v211 = vpop.permute.xlu0 %210
  %v213 = vmul.f32 %v208, %v211
  %v214 = vrot.slane %v213, 4
  %v215 = vadd.f32 %v213, %v214
  %v216 = vrot.slane %v215, 2
  %v217 = vadd.f32 %v215, %v216
  %v218 = vrot.slane %v217, 1
  %v219 = vadd.f32 %v217, %v218
  %220 = vset.pattern.permute.xlu0 22
  %221 = vperm.xlu0 %220, %v11
  %v222 = vpop.permute.xlu0 %221
  %v224 = vadd.f32 %v219, %v222
  %v225 = vand.u32 2147483647, %v224
  %v226 = vsub.f32 0.0, %v225
  %v227 = vmul.f32 %v226, 1.442695
  %v228 = vpow.pop %v227
  %v229 = vadd.f32 %v228, 1.0
  %v230 = vrcp.pop %v229
  %vm231 = vcmp.ge.f32.partialorder %v224, 0.0
  %v232 = vsub.f32 1.0, %v230
  %v233 = vsel %vm231, %v230, %v232
  %234 = vst [vmem:[%s2] sm:$0x1] %v233
  // Predicated region
  $region10: #{simplenet_forward.1} parent=0 // pred_check
    _
  $region11: #{simplenet_forward.1} parent=0 // pred_check_branch
    %236 = sbr.rel (0) target = $region13
  $region12: #{simplenet_forward.1} parent=0 // pred_region
    _
  $region13: #{simplenet_forward.1} parent=0 // pred_fallthru
    _
  // Predicated region
  $region14: #{simplenet_forward.1} parent=0 // pred_check
    _
  $region15: #{simplenet_forward.1} parent=0 // pred_check_branch
    %238 = sbr.rel (0) target = $region17
  $region16: #{simplenet_forward.1} parent=0 // pred_region
    _
  $region17: #{simplenet_forward.1} parent=0 // pred_fallthru
    _

</llo_original>
